<compile_context>
chip_gen: v5e
topology: v5e:2x2
jax: 0.10.0
libtpu: 0.0.40
codegen_flags: <defaults>
</compile_context>

<pallas_src>
import jax
import jax.numpy as jnp
from jax.experimental import pallas as pl
from jax.experimental.pallas import tpu as pltpu


def _convt1d_kernel(x_ref, w_ref, b_ref, o_ref):
    # x_ref: (TB, FK)  w_ref: (1, FK)  b_ref: (1, FK)  o_ref: (TB, FK)
    # Fused elementwise multiply-add on the VPU; (1, FK) broadcasts over rows.
    o_ref[...] = x_ref[...] * w_ref[...] + b_ref[...]


def convolution_transpose_1d(x, W, bias, *, target_block_bytes=4 * 1024 * 1024):
    """x: (B, F, K) float32, W: (F, K), bias: (K,) -> (B, F, K)."""
    B, F, K = x.shape
    FK = F * K

    # Lane-dense reshape: last dim carries F*K contiguous elements.
    x2 = x.reshape(B, FK)
    w2 = W.reshape(1, FK)
    # bias broadcasts over K only; materialize it across F once in the wrapper.
    b2 = jnp.broadcast_to(bias.reshape(1, K), (F, K)).reshape(1, FK)

    # Batch-row tile: multiple of 8 sublanes, ~target_block_bytes of f32 per
    # x block, but never larger than B (full-extent blocks are always legal).
    bytes_per_row = FK * x.dtype.itemsize
    rows = max(8, target_block_bytes // max(bytes_per_row, 1))
    rows = (rows // 8) * 8
    tb = B if B <= rows else rows

    grid = (pl.cdiv(B, tb),)

    # Explicit VMEM budget: ~2 buffers each for x and out blocks + residents,
    # with headroom; stays well under v7x's 64 MiB per-TC VMEM.
    block_bytes = tb * FK * x.dtype.itemsize
    vmem_limit = int(min(48 * 1024 * 1024, max(16 * 1024 * 1024, 6 * block_bytes)))

    out2 = pl.pallas_call(
        _convt1d_kernel,
        out_shape=jax.ShapeDtypeStruct((B, FK), x.dtype),
        grid_spec=pltpu.PrefetchScalarGridSpec(
            num_scalar_prefetch=0,
            grid=grid,
            in_specs=[
                pl.BlockSpec((tb, FK), lambda i: (i, 0)),   # x: batch-row slab
                pl.BlockSpec((1, FK), lambda i: (0, 0)),    # W: resident
                pl.BlockSpec((1, FK), lambda i: (0, 0)),    # bias: resident
            ],
            out_specs=pl.BlockSpec((tb, FK), lambda i: (i, 0)),
        ),
        compiler_params=pltpu.CompilerParams(
            dimension_semantics=("parallel",),
            vmem_limit_bytes=vmem_limit,
        ),
    )(x2, w2, b2)

    return out2.reshape(B, F, K)


if __name__ == "__main__":
    # Module hyperparameters (synthetic, deterministic init — no checkpoint load)
    batch = 2
    in_features = 4
    kernal_size = 16

    key = jax.random.PRNGKey(0)
    kx, kw, kb = jax.random.split(key, 3)

    # Matches nn.Parameter(torch.rand(...) * 2 - 1): uniform in [-1, 1)
    W = jax.random.uniform(kw, (in_features, kernal_size), jnp.float32) * 2.0 - 1.0
    bias = jax.random.uniform(kb, (kernal_size,), jnp.float32) * 2.0 - 1.0
    x = jax.random.uniform(kx, (batch, in_features, kernal_size), jnp.float32)

    out = convolution_transpose_1d(x, W, bias)
    out = jax.block_until_ready(out)

    # Reference check against plain JAX broadcasting (same as the torch forward)
    ref = x * W + bias
    assert out.shape == ref.shape
    assert jnp.allclose(out, ref, atol=1e-6, rtol=1e-6)

    print("KERNEL_OK")
</pallas_src>

<mosaic_0001>
module attributes {stable_mosaic.version = 11 : i64} {
  func.func @_convt1d_kernel(%arg0: i32, %arg1: memref<2x64xf32, #tpu.memory_space<vmem>>, %arg2: memref<1x64xf32, #tpu.memory_space<vmem>>, %arg3: memref<1x64xf32, #tpu.memory_space<vmem>>, %arg4: memref<2x64xf32, #tpu.memory_space<vmem>>) attributes {dimension_semantics = [#tpu.dimension_semantics<parallel>], iteration_bounds = array<i64: 1>, scalar_prefetch = 0 : i64, scratch_operands = 0 : i64, tpu.core_type = #tpu.core_type<tc>, window_params = [{transform_indices = @transform_0, window_bounds = array<i64: 2, 64>}, {pipeline_mode = #tpu.pipeline_mode<synchronous>, transform_indices = @transform_1, window_bounds = array<i64: 1, 64>}, {pipeline_mode = #tpu.pipeline_mode<synchronous>, transform_indices = @transform_2, window_bounds = array<i64: 1, 64>}, {transform_indices = @transform_3, window_bounds = array<i64: 2, 64>}]} {
    %c0 = arith.constant 0 : index
    %c0_0 = arith.constant 0 : index
    %0 = vector.load %arg1[%c0, %c0_0] : memref<2x64xf32, #tpu.memory_space<vmem>>, vector<2x64xf32>
    %c0_1 = arith.constant 0 : index
    %c0_2 = arith.constant 0 : index
    %1 = vector.load %arg2[%c0_1, %c0_2] : memref<1x64xf32, #tpu.memory_space<vmem>>, vector<1x64xf32>
    %2 = vector.broadcast %1 : vector<1x64xf32> to vector<2x64xf32>
    %3 = arith.mulf %0, %2 : vector<2x64xf32>
    %c0_3 = arith.constant 0 : index
    %c0_4 = arith.constant 0 : index
    %4 = vector.load %arg3[%c0_3, %c0_4] : memref<1x64xf32, #tpu.memory_space<vmem>>, vector<1x64xf32>
    %5 = vector.broadcast %4 : vector<1x64xf32> to vector<2x64xf32>
    %6 = arith.addf %3, %5 : vector<2x64xf32>
    %c0_5 = arith.constant 0 : index
    %c0_6 = arith.constant 0 : index
    %7 = vector.load %arg4[%c0_5, %c0_6] : memref<2x64xf32, #tpu.memory_space<vmem>>, vector<2x64xf32>
    tpu.vector_store %arg4[%c0_5, %c0_6], %6 {strides = array<i32>} : memref<2x64xf32, #tpu.memory_space<vmem>>, vector<2x64xf32>,
    return
  }
  func.func @transform_0(%arg0: i32) -> (i32, i32) {
    %c0_i32 = arith.constant 0 : i32
    %c0_i32_0 = arith.constant 0 : i32
    return %arg0, %c0_i32 : i32, i32
  }
  func.func @transform_1(%arg0: i32) -> (i32, i32) {
    %c0_i32 = arith.constant 0 : i32
    %c0_i32_0 = arith.constant 0 : i32
    %c0_i32_1 = arith.constant 0 : i32
    return %c0_i32, %c0_i32_0 : i32, i32
  }
  func.func @transform_2(%arg0: i32) -> (i32, i32) {
    %c0_i32 = arith.constant 0 : i32
    %c0_i32_0 = arith.constant 0 : i32
    %c0_i32_1 = arith.constant 0 : i32
    return %c0_i32, %c0_i32_0 : i32, i32
  }
  func.func @transform_3(%arg0: i32) -> (i32, i32) {
    %c0_i32 = arith.constant 0 : i32
    %c0_i32_0 = arith.constant 0 : i32
    return %arg0, %c0_i32 : i32, i32
  }
}

</mosaic_0001>

<llo_original>
// kernel: tpu_custom_call.1
$region0: #{tpu_custom_call.1}
  #allocation0 [shape = 'u32[]', space=smem, size = 0x4, offset = 0x4, fixed_abs, tag = 'smem constant byte address 0x4 - core index']
  #allocation1 [shape = 'u32[72,128]{1,0:T(1,128)}', space=vmem, size = 0x9000, scoped, tag = 'internal scratch']
  %s0 = inlined_call_operand.hbm [shape: f32[2,64], index: 0, kind: input, shape index: {}]
  %s1 = inlined_call_operand.hbm [shape: f32[1,64], index: 1, kind: input, shape index: {}]
  %s2 = inlined_call_operand.vmem [shape: f32[1,64], index: 2, kind: input, shape index: {}]
  %s3 = inlined_call_operand.hbm [shape: f32[2,64], index: 3, kind: output, shape index: {}]
  %s4 = sld [smem:[#allocation0]]
  $region30: #{tpu_custom_call.1} parent=0
    _
  %s6 = ssub.s32 1, %s4
  %s7 = scalar_select 0, %s6, %s4
  $region1: #{tpu_custom_call.1} parent=0
    #allocation2 [shape = 'u8[1024]{0}', space=vmem, size = 0x400, scoped, tag = 'input window, operand 0, single buffered']
    #allocation3 [shape = 's32[1]{0}', space=sflag, size = 0x4, scoped, tag = 'scoped memory for tpu_custom_call.1']
    #allocation4 [shape = 's32[1]{0}', space=sflag, size = 0x4, scoped, tag = 'scoped memory for tpu_custom_call.1']
    #allocation5 [shape = 'u8[512]{0}', space=vmem, size = 0x400, scoped, tag = 'input window, operand 1, single buffered']
    #allocation6 [shape = 's32[1]{0}', space=sflag, size = 0x4, scoped, tag = 'scoped memory for tpu_custom_call.1']
    #allocation7 [shape = 'u8[1024]{0}', space=vmem, size = 0x400, scoped, tag = 'output window, operand 0, single buffered']
    %8 = vsyncpa [#allocation3], 0
    %9 = vsyncpa [#allocation6], 0
    %10 = vsyncpa [#allocation4], 0
    // Predicated region
    $region2: #{tpu_custom_call.1} parent=1 // pred_check
      _
    $region3: #{tpu_custom_call.1} parent=1 // pred_check_branch
      %12 = sbr.rel (0) target = $region5
    $region4: #{tpu_custom_call.1} parent=1 // pred_region
      %14 = vsyncadd [#allocation3], 0
      %s16 = sshll.u32 %s0, 4
      %s17 = int_to_ptr.hbm [resolvable:$true] %s16
      %s18 = sshll.u32 [#allocation2], 4
      %s19 = int_to_ptr.vmem [resolvable:$true] %s18
      %21 = dma.hbm_to_vmem [thread:$0]  %s17, 32, %s19, [#allocation3]
    $region5: #{tpu_custom_call.1} parent=1 // pred_fallthru
      _
    // Predicated region
    $region6: #{tpu_custom_call.1} parent=1 // pred_check
      _
    $region7: #{tpu_custom_call.1} parent=1 // pred_check_branch
      %23 = sbr.rel (0) target = $region9
    $region8: #{tpu_custom_call.1} parent=1 // pred_region
      %25 = vsyncadd [#allocation6], 0
      %s27 = sshll.u32 %s1, 4
      %s28 = int_to_ptr.hbm [resolvable:$true] %s27
      %s29 = sshll.u32 [#allocation5], 4
      %s30 = int_to_ptr.vmem [resolvable:$true] %s29
      %32 = dma.hbm_to_vmem [thread:$0]  %s28, 16, %s30, [#allocation6]
    $region9: #{tpu_custom_call.1} parent=1 // pred_fallthru
      _
    // Predicated region
    $region10: #{tpu_custom_call.1} parent=1 // pred_check
      _
    $region11: #{tpu_custom_call.1} parent=1 // pred_check_branch
      %34 = sbr.rel (0) target = $region13
    $region12: #{tpu_custom_call.1} parent=1 // pred_region
      _
    $region13: #{tpu_custom_call.1} parent=1 // pred_fallthru
      _
    // Predicated region
    $region14: #{tpu_custom_call.1} parent=1 // pred_check
      _
    $region15: #{tpu_custom_call.1} parent=1 // pred_check_branch
      %36 = sbr.rel (0) target = $region17
    $region16: #{tpu_custom_call.1} parent=1 // pred_region
      %38 = dma.done [#allocation3], 32
    $region17: #{tpu_custom_call.1} parent=1 // pred_fallthru
      _
    // Predicated region
    $region18: #{tpu_custom_call.1} parent=1 // pred_check
      _
    $region19: #{tpu_custom_call.1} parent=1 // pred_check_branch
      %40 = sbr.rel (0) target = $region21
    $region20: #{tpu_custom_call.1} parent=1 // pred_region
      %42 = dma.done [#allocation6], 16
    $region21: #{tpu_custom_call.1} parent=1 // pred_fallthru
      _
    %v43 = vld [vmem:[#allocation2] sm:$0x3]
    %v44 = vld [vmem:[#allocation5] sm:$0x1]
    %v46 = vperm.slane %v44, 0
    %v48 = vmul.f32 %v43, %v46
    %v49 = vld [vmem:[%s2] sm:$0x1]
    %v51 = vperm.slane %v49, 0
    %v53 = vadd.f32 %v48, %v51
    %vm54 = vcmask 517120
    %55 = vst.msk [vmem:[#allocation7] sm:$0x3] %vm54, %v53
    // Predicated region
    $region22: #{tpu_custom_call.1} parent=1 // pred_check
      _
    $region23: #{tpu_custom_call.1} parent=1 // pred_check_branch
      %57 = sbr.rel (0) target = $region25
    $region24: #{tpu_custom_call.1} parent=1 // pred_region
      %59 = vsyncadd [#allocation4], 0
      %s61 = sshll.u32 [#allocation7], 4
      %s62 = int_to_ptr.vmem [resolvable:$true] %s61
      %s63 = sshll.u32 %s3, 4
      %s64 = int_to_ptr.hbm [resolvable:$true] %s63
      %66 = dma.vmem_to_hbm [thread:$0]  %s62, 32, %s64, [#allocation4]
    $region25: #{tpu_custom_call.1} parent=1 // pred_fallthru
      _
    // Predicated region
    $region26: #{tpu_custom_call.1} parent=1 // pred_check
      _
    $region27: #{tpu_custom_call.1} parent=1 // pred_check_branch
      %68 = sbr.rel (0) target = $region29
    $region28: #{tpu_custom_call.1} parent=1 // pred_region
      %70 = dma.done [#allocation4], 32
    $region29: #{tpu_custom_call.1} parent=1 // pred_fallthru
      _
    %71 = vsyncpa [#allocation3], 1
    %72 = vsyncpa [#allocation6], 1
    %73 = vsyncpa [#allocation4], 1

</llo_original>
